<compile_context>
chip_gen: v7x
topology: tpu7x:2x2x1
jax: 0.10.0
libtpu: 0.0.40
codegen_flags: <defaults>
</compile_context>

<pallas_src>
import functools

import jax
import jax.numpy as jnp
from jax.experimental import pallas as pl
from jax.experimental.pallas import tpu as pltpu

block_size = 64
dropout = 0.2
n_embd = 198
n_head = 6
head_size = n_embd // n_head  # 33

_HP = 128          # padded head size (lane-dense stores, tile-aligned slices)
_NEG_LARGE = -1e30  # python literal, NOT a jnp array (no closure capture)


def head_kernel(x_ref, wqkv_ref, o_ref, *, compute_dtype):
    # x_ref: (Bb, T, C) compute_dtype; wqkv_ref: (C, 3*Hp) compute_dtype
    # o_ref: (Bb, T, Hp)
    Bb, T, C = x_ref.shape
    Hp = o_ref.shape[-1]

    # ---- fused QKV projection on the flattened batch (one MXU pass) ----
    x2d = x_ref[...].reshape(Bb * T, C)                       # (Bb*T, C)
    qkv = jnp.dot(x2d, wqkv_ref[...],
                  preferred_element_type=jnp.float32)          # (Bb*T, 3Hp) f32
    qkv = qkv.reshape(Bb, T, 3 * Hp)

    # Lane-tile aligned slices (offsets 0 / 128 / 256 with Hp=128).
    scale = float(C) ** -0.5                                   # reference uses C=n_embd
    q = (qkv[:, :, 0:Hp] * scale).astype(compute_dtype)        # scale T*H elems, not T*T
    k = qkv[:, :, Hp:2 * Hp].astype(compute_dtype)
    v = qkv[:, :, 2 * Hp:3 * Hp].astype(compute_dtype)

    # scores 'bqh,bkh->bqk' — contraction over the (zero-padded) head dim,
    # no transpose; padded columns are zero in both q and k, hence inert.
    s = jax.lax.dot_general(
        q, k,
        dimension_numbers=(((2,), (2,)), ((0,), (0,))),
        preferred_element_type=jnp.float32)                    # (Bb, T, T) f32

    # Causal mask (== tril buffer).  Large finite negative -> NaN-safe.
    row = jax.lax.broadcasted_iota(jnp.int32, (T, T), 0)
    col = jax.lax.broadcasted_iota(jnp.int32, (T, T), 1)
    s = jnp.where((col <= row)[None, :, :], s, _NEG_LARGE)

    # Numerically stable softmax along the last axis (f32).
    s = s - jnp.max(s, axis=-1, keepdims=True)
    p = jnp.exp(s)
    p = p * pl.reciprocal(jnp.sum(p, axis=-1, keepdims=True), approx=False)

    # out = p @ v : 'bqk,bkh->bqh'  (bf16 inputs, f32 accumulation)
    out = jax.lax.dot_general(
        p.astype(compute_dtype), v,
        dimension_numbers=(((2,), (1,)), ((0,), (0,))),
        preferred_element_type=jnp.float32)                    # (Bb, T, Hp)
    o_ref[...] = out.astype(o_ref.dtype)


def fuse_qkv_weights(wq, wk, wv, *, compute_dtype=jnp.bfloat16, hp=_HP):
    """Fuse + pad + transpose the PyTorch-style (H, C) weights into a single
    (C, 3*Hp) matrix.  Call ONCE at parameter-preparation time."""
    H, C = wq.shape
    assert hp >= H

    def pad(w):  # (H, C) -> (Hp, C), zero-padded head rows are inert
        return jnp.pad(w, ((0, hp - H), (0, 0)))

    wqkv = jnp.concatenate([pad(wq), pad(wk), pad(wv)], axis=0)  # (3Hp, C)
    return wqkv.T.astype(compute_dtype)                          # (C, 3Hp)


def head_forward(x, wqkv, *, head_size=head_size,
                 compute_dtype=jnp.bfloat16, out_dtype=None, grid_b=None):
    """x: (B, T, C).  wqkv: fused (C, 3*Hp) weight from fuse_qkv_weights().

    compute_dtype: dtype fed to the MXU dots (bf16 default on v5e/v6e/v7x;
                   accumulation, masking and softmax stay float32).
    out_dtype:     output dtype (default: x.dtype).
    grid_b:        grid steps over the batch; None = auto (keeps <=256 rows
                   per step so vregs don't spill and the x DMA is pipelined).
                   Use >=2 on v7x so both TensorCores are fed.
    """
    B, T, C = x.shape
    Hp3 = wqkv.shape[1]
    Hp = Hp3 // 3
    out_dtype = out_dtype or x.dtype

    # Keep T a sublane multiple so the in-kernel (Bb,T,C)->(Bb*T,C) reshape is
    # tile-aligned (no hidden VMEM copy).  Causal mask makes padded keys inert.
    Tp = ((T + 7) // 8) * 8
    if Tp != T:
        x = jnp.pad(x, ((0, 0), (0, Tp - T), (0, 0)))

    if grid_b is None:
        grid_b = B
        for g in range(1, B + 1):
            if B % g == 0 and (B // g) * Tp <= 256:
                grid_b = g
                break
    assert B % grid_b == 0, (B, grid_b)
    Bb = B // grid_b

    xc = x.astype(compute_dtype)
    kernel = functools.partial(head_kernel, compute_dtype=compute_dtype)

    out = pl.pallas_call(
        kernel,
        out_shape=jax.ShapeDtypeStruct((B, Tp, Hp), out_dtype),
        grid_spec=pltpu.PrefetchScalarGridSpec(
            num_scalar_prefetch=0,
            grid=(grid_b,),
            in_specs=[
                pl.BlockSpec((Bb, Tp, C), lambda b: (b, 0, 0)),
                pl.BlockSpec((C, Hp3), lambda b: (0, 0)),
            ],
            out_specs=pl.BlockSpec((Bb, Tp, Hp), lambda b: (b, 0, 0)),
        ),
        compiler_params=pltpu.CompilerParams(
            dimension_semantics=("parallel",)),
    )(xc, wqkv)

    return out[:, :T, :head_size]


def head_reference(x, wq, wk, wv):
    """Pure-JAX reference matching the PyTorch forward (eval mode)."""
    B, T, C = x.shape
    q = x @ wq.T
    k = x @ wk.T
    v = x @ wv.T
    wei = (q @ jnp.swapaxes(k, -2, -1)) * (C ** -0.5)
    mask = jnp.tril(jnp.ones((T, T), dtype=bool))
    wei = jnp.where(mask, wei, -jnp.inf)
    wei = jax.nn.softmax(wei, axis=-1)
    return wei @ v


if __name__ == "__main__":
    key = jax.random.PRNGKey(0)
    k_x, k_q, k_k, k_v = jax.random.split(key, 4)

    B, T, C = 2, 8, n_embd          # T <= block_size
    H = head_size

    x = jax.random.normal(k_x, (B, T, C), dtype=jnp.float32)
    # nn.Linear default init: U(-1/sqrt(fan_in), 1/sqrt(fan_in)), shape (out, in)
    bound = 1.0 / (C ** 0.5)
    wq = jax.random.uniform(k_q, (H, C), jnp.float32, -bound, bound)
    wk = jax.random.uniform(k_k, (H, C), jnp.float32, -bound, bound)
    wv = jax.random.uniform(k_v, (H, C), jnp.float32, -bound, bound)

    # Prepare the fused weight once (param-prep time), then run the kernel.
    wqkv = fuse_qkv_weights(wq, wk, wv, compute_dtype=jnp.bfloat16)
    out = head_forward(x, wqkv, compute_dtype=jnp.bfloat16)
    out = jax.block_until_ready(out)

    ref = head_reference(x, wq, wk, wv)
    assert out.shape == (B, T, H), out.shape
    # bf16 MXU inputs (f32 accumulation/softmax) -> looser tolerance vs f32 ref.
    assert jnp.allclose(out, ref, atol=3e-2, rtol=3e-2), float(
        jnp.max(jnp.abs(out - ref)))

    print("KERNEL_OK")
</pallas_src>

<mosaic_0001>
module attributes {stable_mosaic.version = 11 : i64} {
  func.func @head_kernel(%arg0: i32, %arg1: memref<2x8x198xbf16, #tpu.memory_space<vmem>>, %arg2: memref<198x384xbf16, #tpu.memory_space<vmem>>, %arg3: memref<2x8x128xf32, #tpu.memory_space<vmem>>) attributes {dimension_semantics = [#tpu.dimension_semantics<parallel>], iteration_bounds = array<i64: 1>, scalar_prefetch = 0 : i64, scratch_operands = 0 : i64, tpu.core_type = #tpu.core_type<tc>, window_params = [{transform_indices = @transform_0, window_bounds = array<i64: 2, 8, 198>}, {pipeline_mode = #tpu.pipeline_mode<synchronous>, transform_indices = @transform_1, window_bounds = array<i64: 198, 384>}, {transform_indices = @transform_2, window_bounds = array<i64: 2, 8, 128>}]} {
    %c0 = arith.constant 0 : index
    %c0_0 = arith.constant 0 : index
    %c0_1 = arith.constant 0 : index
    %0 = vector.load %arg1[%c0, %c0_0, %c0_1] : memref<2x8x198xbf16, #tpu.memory_space<vmem>>, vector<2x8x198xbf16>
    %1 = vector.shape_cast %0 : vector<2x8x198xbf16> to vector<16x198xbf16>
    %c0_2 = arith.constant 0 : index
    %c0_3 = arith.constant 0 : index
    %2 = vector.load %arg2[%c0_2, %c0_3] : memref<198x384xbf16, #tpu.memory_space<vmem>>, vector<198x384xbf16>
    %cst = arith.constant dense<0.000000e+00> : vector<16x384xf32>
    %3 = tpu.matmul %1, %2, %cst {dimension_numbers = #tpu.dot_dimension_numbers<[1], [0], [0], [1], [0, 0, 1, 1], [], []>} : vector<16x198xbf16>, vector<198x384xbf16>, vector<16x384xf32> -> vector<16x384xf32>
    %4 = vector.shape_cast %3 : vector<16x384xf32> to vector<2x8x384xf32>
    %5 = vector.extract_strided_slice %4 {offsets = [0, 0, 0], sizes = [2, 8, 128], strides = [1, 1, 1]} : vector<2x8x384xf32> to vector<2x8x128xf32>
    %cst_4 = arith.constant 0.0710669085 : f32
    %6 = vector.broadcast %cst_4 : f32 to vector<2x8x128xf32>
    %7 = arith.mulf %5, %6 : vector<2x8x128xf32>
    %8 = arith.truncf %7 : vector<2x8x128xf32> to vector<2x8x128xbf16>
    %9 = vector.extract_strided_slice %4 {offsets = [0, 0, 128], sizes = [2, 8, 128], strides = [1, 1, 1]} : vector<2x8x384xf32> to vector<2x8x128xf32>
    %10 = arith.truncf %9 : vector<2x8x128xf32> to vector<2x8x128xbf16>
    %11 = vector.extract_strided_slice %4 {offsets = [0, 0, 256], sizes = [2, 8, 128], strides = [1, 1, 1]} : vector<2x8x384xf32> to vector<2x8x128xf32>
    %12 = arith.truncf %11 : vector<2x8x128xf32> to vector<2x8x128xbf16>
    %cst_5 = arith.constant dense<0.000000e+00> : vector<2x8x8xf32>
    %13 = tpu.matmul %8, %10, %cst_5 {dimension_numbers = #tpu.dot_dimension_numbers<[2], [2], [1], [1], [0, 0, 0, 1, 1, 1], [0], [0]>} : vector<2x8x128xbf16>, vector<2x8x128xbf16>, vector<2x8x8xf32> -> vector<2x8x8xf32>
    %14 = tpu.iota {dimensions = array<i32: 0>} : vector<8x8xi32>
    %15 = tpu.iota {dimensions = array<i32: 1>} : vector<8x8xi32>
    %16 = arith.cmpi sle, %15, %14 : vector<8x8xi32>
    %17 = vector.shape_cast %16 : vector<8x8xi1> to vector<1x8x8xi1>
    %cst_6 = arith.constant -1.000000e+30 : f32
    %18 = vector.shape_cast %17 : vector<1x8x8xi1> to vector<1x8x8xi1>
    %19 = vector.broadcast %18 : vector<1x8x8xi1> to vector<2x8x8xi1>
    %20 = vector.broadcast %cst_6 : f32 to vector<2x8x8xf32>
    %21 = arith.select %19, %13, %20 : vector<2x8x8xi1>, vector<2x8x8xf32>
    %cst_7 = arith.constant dense<0xFF800000> : vector<2x8xf32>
    %22 = vector.multi_reduction <maximumf>, %21, %cst_7 [2] : vector<2x8x8xf32> to vector<2x8xf32>
    %23 = vector.shape_cast %22 : vector<2x8xf32> to vector<2x8x1xf32>
    %24 = vector.broadcast %23 : vector<2x8x1xf32> to vector<2x8x8xf32>
    %25 = arith.subf %21, %24 : vector<2x8x8xf32>
    %26 = math.exp %25 : vector<2x8x8xf32>
    %cst_8 = arith.constant dense<0.000000e+00> : vector<2x8xf32>
    %27 = vector.multi_reduction <add>, %26, %cst_8 [2] : vector<2x8x8xf32> to vector<2x8xf32>
    %28 = vector.shape_cast %27 : vector<2x8xf32> to vector<2x8x1xf32>
    %29 = tpu.reciprocal %28 : vector<2x8x1xf32> -> vector<2x8x1xf32>
    %30 = vector.broadcast %29 : vector<2x8x1xf32> to vector<2x8x8xf32>
    %31 = arith.mulf %26, %30 : vector<2x8x8xf32>
    %32 = arith.truncf %31 : vector<2x8x8xf32> to vector<2x8x8xbf16>
    %cst_9 = arith.constant dense<0.000000e+00> : vector<2x8x128xf32>
    %33 = tpu.matmul %32, %12, %cst_9 {dimension_numbers = #tpu.dot_dimension_numbers<[2], [1], [1], [2], [0, 0, 0, 1, 1, 2], [0], [0]>} : vector<2x8x8xbf16>, vector<2x8x128xbf16>, vector<2x8x128xf32> -> vector<2x8x128xf32>
    %c0_10 = arith.constant 0 : index
    %c0_11 = arith.constant 0 : index
    %c0_12 = arith.constant 0 : index
    %34 = vector.load %arg3[%c0_10, %c0_11, %c0_12] : memref<2x8x128xf32, #tpu.memory_space<vmem>>, vector<2x8x128xf32>
    tpu.vector_store %arg3[%c0_10, %c0_11, %c0_12], %33 {strides = array<i32>} : memref<2x8x128xf32, #tpu.memory_space<vmem>>, vector<2x8x128xf32>,
    return
  }
  func.func @transform_0(%arg0: i32) -> (i32, i32, i32) {
    %c0_i32 = arith.constant 0 : i32
    %c0_i32_0 = arith.constant 0 : i32
    %c0_i32_1 = arith.constant 0 : i32
    return %arg0, %c0_i32, %c0_i32_0 : i32, i32, i32
  }
  func.func @transform_1(%arg0: i32) -> (i32, i32) {
    %c0_i32 = arith.constant 0 : i32
    %c0_i32_0 = arith.constant 0 : i32
    %c0_i32_1 = arith.constant 0 : i32
    return %c0_i32, %c0_i32_0 : i32, i32
  }
  func.func @transform_2(%arg0: i32) -> (i32, i32, i32) {
    %c0_i32 = arith.constant 0 : i32
    %c0_i32_0 = arith.constant 0 : i32
    %c0_i32_1 = arith.constant 0 : i32
    return %arg0, %c0_i32, %c0_i32_0 : i32, i32, i32
  }
}

</mosaic_0001>

<llo_original>
// kernel: tpu_custom_call.1
$region0: #{tpu_custom_call.1}
  #allocation0 [shape = 'u32[]', space=smem, size = 0x4, offset = 0x4, fixed_abs, tag = 'smem constant byte address 0x4 - core index']
  #allocation1 [shape = 'u32[144,128]{1,0:T(1,128)}', space=vmem, size = 0x12000, scoped, tag = 'internal scratch']
  %s0 = inlined_call_operand.hbm [shape: bf16[2,8,198], index: 0, kind: input, shape index: {}]
  %s1 = inlined_call_operand.hbm [shape: bf16[198,384], index: 1, kind: input, shape index: {}]
  %s2 = inlined_call_operand.hbm [shape: f32[2,8,128], index: 2, kind: output, shape index: {}]
  %s3 = sld [smem:[#allocation0]]
  $region26: #{tpu_custom_call.1} parent=0
    _
  %s5 = ssub.s32 1, %s3
  %s6 = scalar_select 0, %s5, %s3
  $region1: #{tpu_custom_call.1} parent=0
    #allocation2 [shape = 'u8[8192]{0}', space=vmem, size = 0x2000, scoped, tag = 'input window, operand 0, single buffered']
    #allocation3 [shape = 's32[1]{0}', space=sflag, size = 0x4, scoped, tag = 'scoped memory for tpu_custom_call.1']
    #allocation4 [shape = 's32[1]{0}', space=sflag, size = 0x4, scoped, tag = 'scoped memory for tpu_custom_call.1']
    #allocation5 [shape = 'u8[153600]{0}', space=vmem, size = 0x25800, scoped, tag = 'input window, operand 1, single buffered']
    #allocation6 [shape = 's32[1]{0}', space=sflag, size = 0x4, scoped, tag = 'scoped memory for tpu_custom_call.1']
    #allocation7 [shape = 'u8[8192]{0}', space=vmem, size = 0x2000, scoped, tag = 'output window, operand 0, single buffered']
    %7 = vsyncpa [#allocation3], 0
    %8 = vsyncpa [#allocation6], 0
    %9 = vsyncpa [#allocation4], 0
    // Predicated region
    $region2: #{tpu_custom_call.1} parent=1 // pred_check
      _
    $region3: #{tpu_custom_call.1} parent=1 // pred_check_branch
      %11 = sbr.rel (0) target = $region5
    $region4: #{tpu_custom_call.1} parent=1 // pred_region
      %s13 = ssub.s32 256, 256
      %14 = vsyncadd [#allocation3], %s13
      %s15 = sshll.u32 [#allocation2], 4
      %s16 = int_to_ptr.vmem [resolvable:$true] %s15
      %21 = dma.hbm_to_vmem [thread:$0]  %s0, 256, %s16, [#allocation3], 128, 128, 8
    $region5: #{tpu_custom_call.1} parent=1 // pred_fallthru
      _
    // Predicated region
    $region6: #{tpu_custom_call.1} parent=1 // pred_check
      _
    $region7: #{tpu_custom_call.1} parent=1 // pred_check_branch
      %23 = sbr.rel (0) target = $region9
    $region8: #{tpu_custom_call.1} parent=1 // pred_region
      %s25 = ssub.s32 4800, 4800
      %26 = vsyncadd [#allocation6], %s25
      %s27 = sshll.u32 [#allocation5], 4
      %s28 = int_to_ptr.vmem [resolvable:$true] %s27
      %33 = dma.hbm_to_vmem [thread:$0]  %s1, 4800, %s28, [#allocation6], 192, 192, 12
    $region9: #{tpu_custom_call.1} parent=1 // pred_fallthru
      _
    // Predicated region
    $region10: #{tpu_custom_call.1} parent=1 // pred_check
      _
    $region11: #{tpu_custom_call.1} parent=1 // pred_check_branch
      %35 = sbr.rel (0) target = $region13
    $region12: #{tpu_custom_call.1} parent=1 // pred_region
      %36 = dma.done [#allocation3], 256
    $region13: #{tpu_custom_call.1} parent=1 // pred_fallthru
      _
    // Predicated region
    $region14: #{tpu_custom_call.1} parent=1 // pred_check
      _
    $region15: #{tpu_custom_call.1} parent=1 // pred_check_branch
      %38 = sbr.rel (0) target = $region17
    $region16: #{tpu_custom_call.1} parent=1 // pred_region
      %39 = dma.done [#allocation6], 4800
    $region17: #{tpu_custom_call.1} parent=1 // pred_fallthru
      _
    %v41 = vld [vmem:[#allocation2] sm:$0xff]
    %v42 = vld [vmem:[#allocation2 + $0x8] sm:$0xff]
    %v43 = vld [vmem:[#allocation5] sm:$0xff]
    %v44 = vld [vmem:[#allocation5 + $0x8] sm:$0xf]
    %v45 = vld [vmem:[#allocation5 + $0xc] sm:$0xff]
    %v46 = vld [vmem:[#allocation5 + $0x14] sm:$0xf]
    %v47 = vld [vmem:[#allocation5 + $0x18] sm:$0xff]
    %v48 = vld [vmem:[#allocation5 + $0x20] sm:$0xf]
    %v49 = vld [vmem:[#allocation5 + $0x24] sm:$0xff]
    %v50 = vld [vmem:[#allocation5 + $0x2c] sm:$0xf]
    %v51 = vld [vmem:[#allocation5 + $0x30] sm:$0xff]
    %v52 = vld [vmem:[#allocation5 + $0x38] sm:$0xf]
    %v53 = vld [vmem:[#allocation5 + $0x3c] sm:$0xff]
    %v54 = vld [vmem:[#allocation5 + $0x44] sm:$0xf]
    %v55 = vld [vmem:[#allocation5 + $0x48] sm:$0xff]
    %v56 = vld [vmem:[#allocation5 + $0x50] sm:$0xf]
    %v57 = vld [vmem:[#allocation5 + $0x54] sm:$0xff]
    %v58 = vld [vmem:[#allocation5 + $0x5c] sm:$0xf]
    %v59 = vld [vmem:[#allocation5 + $0x60] sm:$0xff]
    %v60 = vld [vmem:[#allocation5 + $0x68] sm:$0xf]
    %v61 = vld [vmem:[#allocation5 + $0x6c] sm:$0xff]
    %v62 = vld [vmem:[#allocation5 + $0x74] sm:$0xf]
    %v63 = vld [vmem:[#allocation5 + $0x78] sm:$0xff]
    %v64 = vld [vmem:[#allocation5 + $0x80] sm:$0xf]
    %v65 = vld [vmem:[#allocation5 + $0x84] sm:$0xff]
    %v66 = vld [vmem:[#allocation5 + $0x8c] sm:$0xf]
    %v67 = vld [vmem:[#allocation5 + $0x90] sm:$0xff]
    %v68 = vld [vmem:[#allocation5 + $0x98] sm:$0xf]
    %v69 = vld [vmem:[#allocation5 + $0x9c] sm:$0xff]
    %v70 = vld [vmem:[#allocation5 + $0xa4] sm:$0xf]
    %v71 = vld [vmem:[#allocation5 + $0xa8] sm:$0xff]
    %v72 = vld [vmem:[#allocation5 + $0xb0] sm:$0xf]
    %v73 = vld [vmem:[#allocation5 + $0xb4] sm:$0xff]
    %v74 = vld [vmem:[#allocation5 + $0xbc] sm:$0xf]
    %v75 = vld [vmem:[#allocation5 + $0xc0] sm:$0xff]
    %v76 = vld [vmem:[#allocation5 + $0xc8] sm:$0xf]
    %v77 = vld [vmem:[#allocation5 + $0xcc] sm:$0xff]
    %v78 = vld [vmem:[#allocation5 + $0xd4] sm:$0xf]
    %v79 = vld [vmem:[#allocation5 + $0xd8] sm:$0xff]
    %v80 = vld [vmem:[#allocation5 + $0xe0] sm:$0xf]
    %v81 = vld [vmem:[#allocation5 + $0xe4] sm:$0xff]
    %v82 = vld [vmem:[#allocation5 + $0xec] sm:$0xf]
    %v83 = vld [vmem:[#allocation5 + $0xf0] sm:$0xff]
    %v84 = vld [vmem:[#allocation5 + $0xf8] sm:$0xf]
    %v85 = vld [vmem:[#allocation5 + $0xfc] sm:$0xff]
    %v86 = vld [vmem:[#allocation5 + $0x104] sm:$0xf]
    %v87 = vld [vmem:[#allocation5 + $0x108] sm:$0xff]
    %v88 = vld [vmem:[#allocation5 + $0x110] sm:$0xf]
    %v89 = vld [vmem:[#allocation5 + $0x114] sm:$0xff]
    %v90 = vld [vmem:[#allocation5 + $0x11c] sm:$0xf]
    %v91 = vld [vmem:[#allocation5 + $0x120] sm:$0x77]
    %v92 = vld [vmem:[#allocation5 + $0x128] sm:$0x7]
    %v95 = vunpack.c.l.b16 %v41
    %v96 = vunpack.c.h.b16 %v41
    %v97 = vunpack.c.l.b16 %v42
    %v98 = vunpack.c.h.b16 %v42
    %v99 = vpack.c.b16 %v97, %v95
    %v100 = vpack.c.b16 %v98, %v96
    %v152 = vunpack.c.l.b16 %v43
    %v153 = vunpack.c.h.b16 %v43
    %v154 = vunpack.c.l.b16 %v44
    %v155 = vunpack.c.l.b16 %v45
    %v156 = vunpack.c.h.b16 %v45
    %v157 = vunpack.c.l.b16 %v46
    %v158 = vunpack.c.l.b16 %v47
    %v159 = vunpack.c.h.b16 %v47
    %v160 = vunpack.c.l.b16 %v48
    %v161 = vunpack.c.l.b16 %v49
    %v162 = vunpack.c.h.b16 %v49
    %v163 = vunpack.c.l.b16 %v50
    %v164 = vunpack.c.l.b16 %v51
    %v165 = vunpack.c.h.b16 %v51
    %v166 = vunpack.c.l.b16 %v52
    %v167 = vunpack.c.l.b16 %v53
    %v168 = vunpack.c.h.b16 %v53
    %v169 = vunpack.c.l.b16 %v54
    %v170 = vunpack.c.l.b16 %v55
    %v171 = vunpack.c.h.b16 %v55
    %v172 = vunpack.c.l.b16 %v56
    %v173 = vunpack.c.l.b16 %v57
    %v174 = vunpack.c.h.b16 %v57
    %v175 = vunpack.c.l.b16 %v58
    %v176 = vunpack.c.l.b16 %v59
    %v177 = vunpack.c.h.b16 %v59
    %v178 = vunpack.c.l.b16 %v60
    %v179 = vunpack.c.l.b16 %v61
    %v180 = vunpack.c.h.b16 %v61
    %v181 = vunpack.c.l.b16 %v62
    %v182 = vunpack.c.l.b16 %v63
    %v183 = vunpack.c.h.b16 %v63
    %v184 = vunpack.c.l.b16 %v64
    %v185 = vunpack.c.l.b16 %v65
    %v186 = vunpack.c.h.b16 %v65
    %v187 = vunpack.c.l.b16 %v66
    %v188 = vunpack.c.l.b16 %v67
    %v189 = vunpack.c.h.b16 %v67
    %v190 = vunpack.c.l.b16 %v68
    %v191 = vunpack.c.l.b16 %v69
    %v192 = vunpack.c.h.b16 %v69
    %v193 = vunpack.c.l.b16 %v70
    %v194 = vunpack.c.l.b16 %v71
    %v195 = vunpack.c.h.b16 %v71
    %v196 = vunpack.c.l.b16 %v72
    %v197 = vunpack.c.l.b16 %v73
    %v198 = vunpack.c.h.b16 %v73
    %v199 = vunpack.c.l.b16 %v74
    %v200 = vunpack.c.l.b16 %v75
    %v201 = vunpack.c.h.b16 %v75
    %v202 = vunpack.c.l.b16 %v76
    %v203 = vunpack.c.l.b16 %v77
    %v204 = vunpack.c.h.b16 %v77
    %v205 = vunpack.c.l.b16 %v78
    %v206 = vunpack.c.l.b16 %v79
    %v207 = vunpack.c.h.b16 %v79
    %v208 = vunpack.c.l.b16 %v80
    %v209 = vunpack.c.l.b16 %v81
    %v210 = vunpack.c.h.b16 %v81
    %v211 = vunpack.c.l.b16 %v82
    %v212 = vunpack.c.l.b16 %v83
    %v213 = vunpack.c.h.b16 %v83
    %v214 = vunpack.c.l.b16 %v84
    %v215 = vunpack.c.l.b16 %v85
    %v216 = vunpack.c.h.b16 %v85
    %v217 = vunpack.c.l.b16 %v86
    %v218 = vunpack.c.l.b16 %v87
    %v219 = vunpack.c.h.b16 %v87
    %v220 = vunpack.c.l.b16 %v88
    %v221 = vunpack.c.l.b16 %v89
    %v222 = vunpack.c.h.b16 %v89
    %v223 = vunpack.c.l.b16 %v90
    %v224 = vunpack.c.l.b16 %v91
    %v225 = vunpack.c.h.b16 %v91
    %v226 = vunpack.c.l.b16 %v92
    %v227 = vpack.c.b16 %v155, %v152
    %v228 = vpack.c.b16 %v156, %v153
    %v229 = vpack.c.b16 %v157, %v154
    %v230 = vpack.c.b16 %v161, %v158
    %v231 = vpack.c.b16 %v162, %v159
    %v232 = vpack.c.b16 %v163, %v160
    %v233 = vpack.c.b16 %v167, %v164
    %v234 = vpack.c.b16 %v168, %v165
    %v235 = vpack.c.b16 %v169, %v166
    %v236 = vpack.c.b16 %v173, %v170
    %v237 = vpack.c.b16 %v174, %v171
    %v238 = vpack.c.b16 %v175, %v172
    %v239 = vpack.c.b16 %v179, %v176
    %v240 = vpack.c.b16 %v180, %v177
    %v241 = vpack.c.b16 %v181, %v178
    %v242 = vpack.c.b16 %v185, %v182
    %v243 = vpack.c.b16 %v186, %v183
    %v244 = vpack.c.b16 %v187, %v184
    %v245 = vpack.c.b16 %v191, %v188
    %v246 = vpack.c.b16 %v192, %v189
    %v247 = vpack.c.b16 %v193, %v190
    %v248 = vpack.c.b16 %v197, %v194
    %v249 = vpack.c.b16 %v198, %v195
    %v250 = vpack.c.b16 %v199, %v196
    %v251 = vpack.c.b16 %v203, %v200
    %v252 = vpack.c.b16 %v204, %v201
    %v253 = vpack.c.b16 %v205, %v202
    %v254 = vpack.c.b16 %v209, %v206
    %v255 = vpack.c.b16 %v210, %v207
    %v256 = vpack.c.b16 %v211, %v208
    %v257 = vpack.c.b16 %v215, %v212
    %v258 = vpack.c.b16 %v216, %v213
    %v259 = vpack.c.b16 %v217, %v214
    %v260 = vpack.c.b16 %v221, %v218
    %v261 = vpack.c.b16 %v222, %v219
    %v262 = vpack.c.b16 %v223, %v220
    %v263 = vpack.c.b16 %v224, %v224
    %v264 = vpack.c.b16 %v225, %v225
    %v265 = vpack.c.b16 %v226, %v226
    %vm302 = vcmask 572416
    %v304 = vsel %vm302, %v100, 0
    %vm306 = vcmask 1042432
    %v308 = vsel %vm306, %v263, 0
    %v311 = vsel %vm306, %v264, 0
    %v314 = vsel %vm306, %v265, 0
    %316 = vmatprep.subr.bf16.mxu0 %v228
    %317 = vmatpush1.bf16.msra.mxu0 %v227
    %318 = vmatprep.subr.bf16.mxu0 %v231
    %319 = vmatpush1.bf16.msra.mxu0 %v230
    %320 = vmatprep.subr.bf16.mxu0 %v234
    %321 = vmatpush1.bf16.msra.mxu0 %v233
    %322 = vmatprep.subr.bf16.mxu0 %v237
    %323 = vmatpush1.bf16.msra.mxu0 %v236
    %324 = vmatprep.subr.bf16.mxu0 %v240
    %325 = vmatpush1.bf16.msra.mxu0 %v239
    %326 = vmatprep.subr.bf16.mxu0 %v243
    %327 = vmatpush1.bf16.msra.mxu0 %v242
    %328 = vmatprep.subr.bf16.mxu0 %v246
    %329 = vmatpush1.bf16.msra.mxu0 %v245
    %330 = vmatprep.subr.bf16.mxu0 %v249
    %331 = vmatpush1.bf16.msra.mxu0 %v248
    %332 = vmatprep.subr.bf16.mxu0 %v252
    %333 = vmatpush1.bf16.msra.mxu0 %v251
    %334 = vmatprep.subr.bf16.mxu0 %v255
    %335 = vmatpush1.bf16.msra.mxu0 %v254
    %336 = vmatprep.subr.bf16.mxu0 %v258
    %337 = vmatpush1.bf16.msra.mxu0 %v257
    %338 = vmatprep.subr.bf16.mxu0 %v261
    %339 = vmatpush1.bf16.msra.mxu0 %v260
    %340 = vmatprep.subr.bf16.mxu0 %v311
    %341 = vmatpush1.bf16.msra.mxu0 %v308
    %342 = vmatprep.subr.bf16.mxu0 0
    %343 = vmatpush1.bf16.msra.mxu0 0
    %344 = vmatprep.subr.bf16.mxu0 0
    %345 = vmatpush1.bf16.msra.mxu0 0
    %346 = vmatprep.subr.bf16.mxu0 0
    %347 = vmatpush1.bf16.msra.mxu0 0
    %348 = vmatprep.mubr.bf16.mxu0 %v304
    %349 = vmatmul.mubr.bf16.gmra.mrb[0].mxu0 %v99
    %v350 = vpop.f32.mrb[0].mxu0
    %v351 = vadd.f32 0.0, %v350
    %v352 = vpop.f32.mrb[0].mxu0
    %v353 = vadd.f32 0.0, %v352
    %v354 = vpop.f32.mrb[0].mxu0
    %v355 = vadd.f32 0.0, %v354
    %v356 = vpop.f32.mrb[0].mxu0
    %v357 = vadd.f32 0.0, %v356
    %358 = vdwg.mxu0
    %359 = vmatprep.subr.bf16.mxu0 0
    %360 = vmatpush1.bf16.msra.mxu0 %v229
    %361 = vmatprep.subr.bf16.mxu0 0
    %362 = vmatpush1.bf16.msra.mxu0 %v232
    %363 = vmatprep.subr.bf16.mxu0 0
    %364 = vmatpush1.bf16.msra.mxu0 %v235
    %365 = vmatprep.subr.bf16.mxu0 0
    %366 = vmatpush1.bf16.msra.mxu0 %v238
    %367 = vmatprep.subr.bf16.mxu0 0
    %368 = vmatpush1.bf16.msra.mxu0 %v241
    %369 = vmatprep.subr.bf16.mxu0 0
    %370 = vmatpush1.bf16.msra.mxu0 %v244
    %371 = vmatprep.subr.bf16.mxu0 0
    %372 = vmatpush1.bf16.msra.mxu0 %v247
    %373 = vmatprep.subr.bf16.mxu0 0
    %374 = vmatpush1.bf16.msra.mxu0 %v250
    %375 = vmatprep.subr.bf16.mxu0 0
    %376 = vmatpush1.bf16.msra.mxu0 %v253
    %377 = vmatprep.subr.bf16.mxu0 0
    %378 = vmatpush1.bf16.msra.mxu0 %v256
    %379 = vmatprep.subr.bf16.mxu0 0
    %380 = vmatpush1.bf16.msra.mxu0 %v259
    %381 = vmatprep.subr.bf16.mxu0 0
    %382 = vmatpush1.bf16.msra.mxu0 %v262
    %383 = vmatprep.subr.bf16.mxu0 0
    %384 = vmatpush1.bf16.msra.mxu0 %v314
    %385 = vmatprep.subr.bf16.mxu0 0
    %386 = vmatpush1.bf16.msra.mxu0 0
    %387 = vmatprep.subr.bf16.mxu0 0
    %388 = vmatpush1.bf16.msra.mxu0 0
    %389 = vmatprep.subr.bf16.mxu0 0
    %390 = vmatpush1.bf16.msra.mxu0 0
    %391 = vmatprep.mubr.bf16.mxu0 %v304
    %392 = vmatmul.mubr.bf16.gmra.mrb[0].mxu0 %v99
    %v393 = vpop.f32.mrb[0].mxu0
    %v394 = vadd.f32 0.0, %v393
    %v395 = vpop.f32.mrb[0].mxu0
    %v396 = vpop.f32.mrb[0].mxu0
    %v397 = vadd.f32 0.0, %v396
    %v398 = vpop.f32.mrb[0].mxu0
    %399 = vdwg.mxu0
    %v400 = vmul.f32 %v351, 0.07106691
    %v401 = vmul.f32 %v355, 0.07106691
    %v402 = vpack.c.bf16 %v400, %v400
    %v403 = vpack.c.bf16 %v401, %v401
    %v404 = vpack.c.bf16 %v353, %v353
    %v405 = vpack.c.bf16 %v357, %v357
    %v406 = vpack.c.bf16 %v394, %v394
    %v407 = vpack.c.bf16 %v397, %v397
    %408 = vmatprep.subr.bf16.mxu0 0
    %409 = vmatpush1.bf16.xpose.msra.mxu0 %v404
    %410 = vmatprep.subr.bf16.mxu0 0
    %411 = vmatpush1.bf16.xpose.msra.mxu0 0
    %412 = vmatprep.subr.bf16.mxu0 0
    %413 = vmatpush1.bf16.xpose.msra.mxu0 0
    %414 = vmatprep.subr.bf16.mxu0 0
    %415 = vmatpush1.bf16.xpose.msra.mxu0 0
    %416 = vmatprep.subr.bf16.mxu0 0
    %417 = vmatpush1.bf16.xpose.msra.mxu0 0
    %418 = vmatprep.subr.bf16.mxu0 0
    %419 = vmatpush1.bf16.xpose.msra.mxu0 0
    %420 = vmatprep.subr.bf16.mxu0 0
    %421 = vmatpush1.bf16.xpose.msra.mxu0 0
    %422 = vmatprep.subr.bf16.mxu0 0
    %423 = vmatpush1.bf16.xpose.msra.mxu0 0
    %424 = vmatprep.subr.bf16.mxu0 0
    %425 = vmatpush1.bf16.xpose.msra.mxu0 0
    %426 = vmatprep.subr.bf16.mxu0 0
    %427 = vmatpush1.bf16.xpose.msra.mxu0 0
    %428 = vmatprep.subr.bf16.mxu0 0
    %429 = vmatpush1.bf16.xpose.msra.mxu0 0
    %430 = vmatprep.subr.bf16.mxu0 0
    %431 = vmatpush1.bf16.xpose.msra.mxu0 0
    %432 = vmatprep.subr.bf16.mxu0 0
    %433 = vmatpush1.bf16.xpose.msra.mxu0 0
    %434 = vmatprep.subr.bf16.mxu0 0
    %435 = vmatpush1.bf16.xpose.msra.mxu0 0
    %436 = vmatprep.subr.bf16.mxu0 0
    %437 = vmatpush1.bf16.xpose.msra.mxu0 0
    %438 = vmatprep.subr.bf16.mxu0 0
    %439 = vmatpush1.bf16.xpose.msra.mxu0 0
    %440 = vmatprep.mubr.bf16.mxu0 0
    %441 = vmatmul.mubr.bf16.gmra.mrb[0].mxu0 %v402
    %v442 = vpop.f32.mrb[0].mxu0
    %v443 = vadd.f32 0.0, %v442
    %v444 = vpop.f32.mrb[0].mxu0
    %v445 = vpop.f32.mrb[0].mxu0
    %v446 = vpop.f32.mrb[0].mxu0
    %447 = vdwg.mxu0
    %448 = vmatprep.subr.bf16.mxu0 0
    %449 = vmatpush1.bf16.xpose.msra.mxu0 %v405
    %450 = vmatprep.subr.bf16.mxu0 0
    %451 = vmatpush1.bf16.xpose.msra.mxu0 0
    %452 = vmatprep.subr.bf16.mxu0 0
    %453 = vmatpush1.bf16.xpose.msra.mxu0 0
    %454 = vmatprep.subr.bf16.mxu0 0
    %455 = vmatpush1.bf16.xpose.msra.mxu0 0
    %456 = vmatprep.subr.bf16.mxu0 0
    %457 = vmatpush1.bf16.xpose.msra.mxu0 0
    %458 = vmatprep.subr.bf16.mxu0 0
    %459 = vmatpush1.bf16.xpose.msra.mxu0 0
    %460 = vmatprep.subr.bf16.mxu0 0
    %461 = vmatpush1.bf16.xpose.msra.mxu0 0
    %462 = vmatprep.subr.bf16.mxu0 0
    %463 = vmatpush1.bf16.xpose.msra.mxu0 0
    %464 = vmatprep.subr.bf16.mxu0 0
    %465 = vmatpush1.bf16.xpose.msra.mxu0 0
    %466 = vmatprep.subr.bf16.mxu0 0
    %467 = vmatpush1.bf16.xpose.msra.mxu0 0
    %468 = vmatprep.subr.bf16.mxu0 0
    %469 = vmatpush1.bf16.xpose.msra.mxu0 0
    %470 = vmatprep.subr.bf16.mxu0 0
    %471 = vmatpush1.bf16.xpose.msra.mxu0 0
    %472 = vmatprep.subr.bf16.mxu0 0
    %473 = vmatpush1.bf16.xpose.msra.mxu0 0
    %474 = vmatprep.subr.bf16.mxu0 0
    %475 = vmatpush1.bf16.xpose.msra.mxu0 0
    %476 = vmatprep.subr.bf16.mxu0 0
    %477 = vmatpush1.bf16.xpose.msra.mxu0 0
    %478 = vmatprep.subr.bf16.mxu0 0
    %479 = vmatpush1.bf16.xpose.msra.mxu0 0
    %480 = vmatprep.mubr.bf16.mxu0 0
    %481 = vmatmul.mubr.bf16.gmra.mrb[0].mxu0 %v403
    %v482 = vpop.f32.mrb[0].mxu0
    %v483 = vadd.f32 0.0, %v482
    %v484 = vpop.f32.mrb[0].mxu0
    %v485 = vpop.f32.mrb[0].mxu0
    %v486 = vpop.f32.mrb[0].mxu0
    %487 = vdwg.mxu0
    %v488 = vlaneseq
    %v489 = vshrl.u32 %v488, 7
    %v490 = vlaneseq
    %v491 = vand.u32 %v490, 127
    %vm492 = vcmp.le.s32.totalorder %v491, %v489
    %v493 = vsel %vm492, 1, 0
    %vm494 = vcmp.eq.s32.totalorder %v493, 1
    %v495 = vsel %vm494, %v443, -1e+30
    %v496 = vsel %vm494, %v483, -1e+30
    %vm497 = vcmask 64512
    %v498 = vsel %vm497, %v495, -inf
    %499 = vmax.xlane.f32.xlu0 %v498
    %v500 = vpop.xlane.xlu0 %499
    %v501 = vsel %vm497, %v496, -inf
    %502 = vmax.xlane.f32.xlu0 %v501
    %v503 = vpop.xlane.xlu0 %502
    %v504 = vsub.f32 %v495, %v500
    %v505 = vsub.f32 %v496, %v503
    %v506 = vmul.f32 %v504, 1.442695
    %v507 = vpow.pop %v506
    %v508 = vmul.f32 %v505, 1.442695
    %v509 = vpow.pop %v508
    %v510 = vsel %vm497, %v507, 0.0
    %511 = vadd.xlane.f32.xlu0 %v510
    %v512 = vpop.xlane.xlu0 %511
    %v513 = vsel %vm497, %v509, 0.0
    %514 = vadd.xlane.f32.xlu0 %v513
    %v515 = vpop.xlane.xlu0 %514
    %v516 = vrcp.pop %v512
    %v517 = vrcp.pop %v515
    %v518 = vmul.f32 %v507, %v516
    %v519 = vmul.f32 %v509, %v517
    %v520 = vpack.c.bf16 %v518, %v518
    %v521 = vpack.c.bf16 %v519, %v519
    %v523 = vsel %vm497, %v520, 0
    %vm525 = vcmask 1043456
    %v527 = vsel %vm525, %v406, 0
    %529 = vmatprep.subr.bf16.mxu0 0
    %530 = vmatpush1.bf16.msra.mxu0 %v527
    %531 = vmatprep.subr.bf16.mxu0 0
    %532 = vmatpush1.bf16.msra.mxu0 0
    %533 = vmatprep.subr.bf16.mxu0 0
    %534 = vmatpush1.bf16.msra.mxu0 0
    %535 = vmatprep.subr.bf16.mxu0 0
    %536 = vmatpush1.bf16.msra.mxu0 0
    %537 = vmatprep.subr.bf16.mxu0 0
    %538 = vmatpush1.bf16.msra.mxu0 0
    %539 = vmatprep.subr.bf16.mxu0 0
    %540 = vmatpush1.bf16.msra.mxu0 0
    %541 = vmatprep.subr.bf16.mxu0 0
    %542 = vmatpush1.bf16.msra.mxu0 0
    %543 = vmatprep.subr.bf16.mxu0 0
    %544 = vmatpush1.bf16.msra.mxu0 0
    %545 = vmatprep.subr.bf16.mxu0 0
    %546 = vmatpush1.bf16.msra.mxu0 0
    %547 = vmatprep.subr.bf16.mxu0 0
    %548 = vmatpush1.bf16.msra.mxu0 0
    %549 = vmatprep.subr.bf16.mxu0 0
    %550 = vmatpush1.bf16.msra.mxu0 0
    %551 = vmatprep.subr.bf16.mxu0 0
    %552 = vmatpush1.bf16.msra.mxu0 0
    %553 = vmatprep.subr.bf16.mxu0 0
    %554 = vmatpush1.bf16.msra.mxu0 0
    %555 = vmatprep.subr.bf16.mxu0 0
    %556 = vmatpush1.bf16.msra.mxu0 0
    %557 = vmatprep.subr.bf16.mxu0 0
    %558 = vmatpush1.bf16.msra.mxu0 0
    %559 = vmatprep.subr.bf16.mxu0 0
    %560 = vmatpush1.bf16.msra.mxu0 0
    %561 = vmatprep.mubr.bf16.mxu0 0
    %562 = vmatmul.mubr.bf16.gmra.mrb[0].mxu0 %v523
    %v563 = vpop.f32.mrb[0].mxu0
    %v564 = vadd.f32 0.0, %v563
    %v565 = vpop.f32.mrb[0].mxu0
    %v566 = vpop.f32.mrb[0].mxu0
    %v567 = vpop.f32.mrb[0].mxu0
    %568 = vdwg.mxu0
    %v570 = vsel %vm497, %v521, 0
    %v573 = vsel %vm525, %v407, 0
    %575 = vmatprep.subr.bf16.mxu0 0
    %576 = vmatpush1.bf16.msra.mxu0 %v573
    %577 = vmatprep.subr.bf16.mxu0 0
    %578 = vmatpush1.bf16.msra.mxu0 0
    %579 = vmatprep.subr.bf16.mxu0 0
    %580 = vmatpush1.bf16.msra.mxu0 0
    %581 = vmatprep.subr.bf16.mxu0 0
    %582 = vmatpush1.bf16.msra.mxu0 0
    %583 = vmatprep.subr.bf16.mxu0 0
    %584 = vmatpush1.bf16.msra.mxu0 0
    %585 = vmatprep.subr.bf16.mxu0 0
    %586 = vmatpush1.bf16.msra.mxu0 0
    %587 = vmatprep.subr.bf16.mxu0 0
    %588 = vmatpush1.bf16.msra.mxu0 0
    %589 = vmatprep.subr.bf16.mxu0 0
    %590 = vmatpush1.bf16.msra.mxu0 0
    %591 = vmatprep.subr.bf16.mxu0 0
    %592 = vmatpush1.bf16.msra.mxu0 0
    %593 = vmatprep.subr.bf16.mxu0 0
    %594 = vmatpush1.bf16.msra.mxu0 0
    %595 = vmatprep.subr.bf16.mxu0 0
    %596 = vmatpush1.bf16.msra.mxu0 0
    %597 = vmatprep.subr.bf16.mxu0 0
    %598 = vmatpush1.bf16.msra.mxu0 0
    %599 = vmatprep.subr.bf16.mxu0 0
    %600 = vmatpush1.bf16.msra.mxu0 0
    %601 = vmatprep.subr.bf16.mxu0 0
    %602 = vmatpush1.bf16.msra.mxu0 0
    %603 = vmatprep.subr.bf16.mxu0 0
    %604 = vmatpush1.bf16.msra.mxu0 0
    %605 = vmatprep.subr.bf16.mxu0 0
    %606 = vmatpush1.bf16.msra.mxu0 0
    %607 = vmatprep.mubr.bf16.mxu0 0
    %608 = vmatmul.mubr.bf16.gmra.mrb[0].mxu0 %v570
    %v609 = vpop.f32.mrb[0].mxu0
    %v610 = vadd.f32 0.0, %v609
    %v611 = vpop.f32.mrb[0].mxu0
    %v612 = vpop.f32.mrb[0].mxu0
    %v613 = vpop.f32.mrb[0].mxu0
    %614 = vdwg.mxu0
    %615 = vst [vmem:[#allocation7] sm:$0xff] %v564
    %616 = vst [vmem:[#allocation7 + $0x8] sm:$0xff] %v610
    // Predicated region
    $region18: #{tpu_custom_call.1} parent=1 // pred_check
      _
    $region19: #{tpu_custom_call.1} parent=1 // pred_check_branch
      %618 = sbr.rel (0) target = $region21
    $region20: #{tpu_custom_call.1} parent=1 // pred_region
      %s620 = ssub.s32 256, 256
      %621 = vsyncadd [#allocation4], %s620
      %s622 = sshll.u32 [#allocation7], 4
      %s623 = int_to_ptr.vmem [resolvable:$true] %s622
      %628 = dma.vmem_to_hbm [thread:$0]  %s623, 256, %s2, [#allocation4], 128, 128, 8
    $region21: #{tpu_custom_call.1} parent=1 // pred_fallthru
      _
    // Predicated region
    $region22: #{tpu_custom_call.1} parent=1 // pred_check
      _
    $region23: #{tpu_custom_call.1} parent=1 // pred_check_branch
      %630 = sbr.rel (0) target = $region25
    $region24: #{tpu_custom_call.1} parent=1 // pred_region
      %631 = dma.done [#allocation4], 256
    $region25: #{tpu_custom_call.1} parent=1 // pred_fallthru
      _
    %632 = vsyncpa [#allocation3], 1
    %633 = vsyncpa [#allocation6], 1
    %634 = vsyncpa [#allocation4], 1

</llo_original>
